<compile_context>
chip_gen: v7x
topology: tpu7x:2x2x1
jax: 0.10.0
libtpu: 0.0.40
codegen_flags: <defaults>
</compile_context>

<pallas_src>
import jax
import jax.numpy as jnp
from jax import lax
from jax.experimental import pallas as pl
from jax.experimental.pallas import tpu as pltpu


def _round_up(n, m):
    return ((n + m - 1) // m) * m


def _combine(m1, m2, C):
    """One Dempster combination step on (TB, C) f32 tiles, m1 kept in vregs."""
    omega1 = m1[:, C - 1:C]                       # (TB, 1)
    omega2 = m2[:, C - 1:C]                       # (TB, 1)
    m_comb = m1 * m2 + m1 * omega2 + omega1 * m2  # (TB, C)  -- VPU only
    denom = jnp.sum(m_comb, axis=-1, keepdims=True) + 1e-8
    # Divide on the EUP slot (free relative to the VALU work above).
    return m_comb * pl.reciprocal(denom, approx=True)


def _ds_dempster_kernel(x_ref, o_ref):
    """x_ref: (TB, D, C) input tile; o_ref: (TB, C) combined masses."""
    D = x_ref.shape[1]
    C = x_ref.shape[2]

    m1 = x_ref[:, 0, :].astype(jnp.float32)       # (TB, C), lives in vregs

    if D <= 32:
        # Small, static D: full unroll with static slices (zero-risk lowering,
        # equivalent to fori_loop(unroll=True) for a static trip count).
        for i in range(1, D):
            m1 = _combine(m1, x_ref[:, i, :].astype(jnp.float32), C)
    else:
        def body(i, carry):
            m2 = x_ref[:, i, :].astype(jnp.float32)
            return _combine(carry, m2, C)
        m1 = lax.fori_loop(1, D, body, m1, unroll=8)

    o_ref[...] = m1.astype(o_ref.dtype)


def ds3_dempster(x, *, block_b=None, vmem_budget_bytes=16 * 1024 * 1024):
    """x: (B, input_dim, C) array of mass functions -> (B, C) combined mass.

    Same semantics as the PyTorch DS3_Dempster.forward (returns m1).
    """
    B, D, C = x.shape
    if D < 1:
        raise ValueError("input_dim (D) must be >= 1")

    itemsize = jnp.dtype(x.dtype).itemsize
    b_pad8 = _round_up(B, 8)

    if block_b is None:
        # Double-buffered input chunk + double-buffered output tile per row.
        bytes_per_row = 2 * D * C * itemsize + 2 * C * 4
        tb = vmem_budget_bytes // max(bytes_per_row, 1)
        block_b = max(8, min(1024, (tb // 8) * 8))

    TB = min(block_b, b_pad8)
    TB = max(8, (TB // 8) * 8)                    # (8, 128) sublane alignment

    B_pad = _round_up(B, TB)
    if B_pad != B:
        # Zero padding is safe: padded rows combine to all-zero masses and are
        # sliced off below; rows are independent.
        x = jnp.pad(x, ((0, B_pad - B), (0, 0), (0, 0)))

    out = pl.pallas_call(
        _ds_dempster_kernel,
        out_shape=jax.ShapeDtypeStruct((B_pad, C), x.dtype),
        grid_spec=pltpu.PrefetchScalarGridSpec(
            num_scalar_prefetch=0,
            grid=(B_pad // TB,),
            in_specs=[pl.BlockSpec((TB, D, C), lambda b: (b, 0, 0))],
            out_specs=pl.BlockSpec((TB, C), lambda b: (b, 0)),
        ),
        compiler_params=pltpu.CompilerParams(
            dimension_semantics=("parallel",),    # batch tiles are independent
        ),
    )(x)
    return out[:B]


def ds3_dempster_ref(x):
    """Pure-JAX reference mirroring the PyTorch loop exactly."""
    D = x.shape[1]
    m1 = x[:, 0, :]
    for i in range(1, D):
        m2 = x[:, i, :]
        omega1 = m1[:, -1:]
        omega2 = m2[:, -1:]
        m_comb = m1 * m2 + m1 * omega2 + omega1 * m2
        m1 = m_comb / (jnp.sum(m_comb, axis=-1, keepdims=True) + 1e-8)
    return m1


if __name__ == "__main__":
    # Small shapes consistent with the module: batch=4, input_dim=8,
    # num_class=5 -> C = num_class + 1 = 6 mass values per prototype.
    B, INPUT_DIM, NUM_CLASS = 4, 8, 5
    C = NUM_CLASS + 1

    key = jax.random.PRNGKey(0)
    logits = jax.random.normal(key, (B, INPUT_DIM, C), dtype=jnp.float32)
    # Make the inputs valid mass functions (positive, sum to 1 over last dim).
    x = jax.nn.softmax(logits, axis=-1)

    fn = jax.jit(ds3_dempster)
    out = jax.block_until_ready(fn(x))

    ref = ds3_dempster_ref(x)
    assert out.shape == (B, C)
    # approx=True reciprocal -> slightly looser tolerance than exact divide.
    assert jnp.allclose(out, ref, atol=2e-3, rtol=2e-3), (out, ref)

    print("KERNEL_OK")
</pallas_src>

<mosaic_0001>
module attributes {stable_mosaic.version = 11 : i64} {
  func.func @_ds_dempster_kernel(%arg0: i32, %arg1: memref<8x8x6xf32, #tpu.memory_space<vmem>>, %arg2: memref<8x6xf32, #tpu.memory_space<vmem>>) attributes {dimension_semantics = [#tpu.dimension_semantics<parallel>], iteration_bounds = array<i64: 1>, scalar_prefetch = 0 : i64, scratch_operands = 0 : i64, tpu.core_type = #tpu.core_type<tc>, window_params = [{transform_indices = @transform_0, window_bounds = array<i64: 8, 8, 6>}, {transform_indices = @transform_1, window_bounds = array<i64: 8, 6>}]} {
    %c0 = arith.constant 0 : index
    %c0_0 = arith.constant 0 : index
    %c0_1 = arith.constant 0 : index
    %0 = vector.load %arg1[%c0, %c0_0, %c0_1] : memref<8x8x6xf32, #tpu.memory_space<vmem>>, vector<8x1x6xf32>
    %1 = vector.shape_cast %0 : vector<8x1x6xf32> to vector<8x6xf32>
    %c0_2 = arith.constant 0 : index
    %c1 = arith.constant 1 : index
    %c0_3 = arith.constant 0 : index
    %2 = vector.load %arg1[%c0_2, %c1, %c0_3] : memref<8x8x6xf32, #tpu.memory_space<vmem>>, vector<8x1x6xf32>
    %3 = vector.shape_cast %2 : vector<8x1x6xf32> to vector<8x6xf32>
    %4 = vector.extract_strided_slice %1 {offsets = [0, 5], sizes = [8, 1], strides = [1, 1]} : vector<8x6xf32> to vector<8x1xf32>
    %5 = vector.extract_strided_slice %3 {offsets = [0, 5], sizes = [8, 1], strides = [1, 1]} : vector<8x6xf32> to vector<8x1xf32>
    %6 = arith.mulf %1, %3 : vector<8x6xf32>
    %7 = vector.broadcast %5 : vector<8x1xf32> to vector<8x6xf32>
    %8 = arith.mulf %1, %7 : vector<8x6xf32>
    %9 = arith.addf %6, %8 : vector<8x6xf32>
    %10 = vector.broadcast %4 : vector<8x1xf32> to vector<8x6xf32>
    %11 = arith.mulf %10, %3 : vector<8x6xf32>
    %12 = arith.addf %9, %11 : vector<8x6xf32>
    %cst = arith.constant dense<0.000000e+00> : vector<8xf32>
    %13 = vector.multi_reduction <add>, %12, %cst [1] : vector<8x6xf32> to vector<8xf32>
    %14 = vector.shape_cast %13 : vector<8xf32> to vector<8x1xf32>
    %cst_4 = arith.constant 9.99999993E-9 : f32
    %15 = vector.broadcast %cst_4 : f32 to vector<8x1xf32>
    %16 = arith.addf %14, %15 : vector<8x1xf32>
    %17 = tpu.reciprocal %16 {approx = true} : vector<8x1xf32> -> vector<8x1xf32>
    %18 = vector.broadcast %17 : vector<8x1xf32> to vector<8x6xf32>
    %19 = arith.mulf %12, %18 : vector<8x6xf32>
    %c0_5 = arith.constant 0 : index
    %c2 = arith.constant 2 : index
    %c0_6 = arith.constant 0 : index
    %20 = vector.load %arg1[%c0_5, %c2, %c0_6] : memref<8x8x6xf32, #tpu.memory_space<vmem>>, vector<8x1x6xf32>
    %21 = vector.shape_cast %20 : vector<8x1x6xf32> to vector<8x6xf32>
    %22 = vector.extract_strided_slice %19 {offsets = [0, 5], sizes = [8, 1], strides = [1, 1]} : vector<8x6xf32> to vector<8x1xf32>
    %23 = vector.extract_strided_slice %21 {offsets = [0, 5], sizes = [8, 1], strides = [1, 1]} : vector<8x6xf32> to vector<8x1xf32>
    %24 = arith.mulf %19, %21 : vector<8x6xf32>
    %25 = vector.broadcast %23 : vector<8x1xf32> to vector<8x6xf32>
    %26 = arith.mulf %19, %25 : vector<8x6xf32>
    %27 = arith.addf %24, %26 : vector<8x6xf32>
    %28 = vector.broadcast %22 : vector<8x1xf32> to vector<8x6xf32>
    %29 = arith.mulf %28, %21 : vector<8x6xf32>
    %30 = arith.addf %27, %29 : vector<8x6xf32>
    %cst_7 = arith.constant dense<0.000000e+00> : vector<8xf32>
    %31 = vector.multi_reduction <add>, %30, %cst_7 [1] : vector<8x6xf32> to vector<8xf32>
    %32 = vector.shape_cast %31 : vector<8xf32> to vector<8x1xf32>
    %cst_8 = arith.constant 9.99999993E-9 : f32
    %33 = vector.broadcast %cst_8 : f32 to vector<8x1xf32>
    %34 = arith.addf %32, %33 : vector<8x1xf32>
    %35 = tpu.reciprocal %34 {approx = true} : vector<8x1xf32> -> vector<8x1xf32>
    %36 = vector.broadcast %35 : vector<8x1xf32> to vector<8x6xf32>
    %37 = arith.mulf %30, %36 : vector<8x6xf32>
    %c0_9 = arith.constant 0 : index
    %c3 = arith.constant 3 : index
    %c0_10 = arith.constant 0 : index
    %38 = vector.load %arg1[%c0_9, %c3, %c0_10] : memref<8x8x6xf32, #tpu.memory_space<vmem>>, vector<8x1x6xf32>
    %39 = vector.shape_cast %38 : vector<8x1x6xf32> to vector<8x6xf32>
    %40 = vector.extract_strided_slice %37 {offsets = [0, 5], sizes = [8, 1], strides = [1, 1]} : vector<8x6xf32> to vector<8x1xf32>
    %41 = vector.extract_strided_slice %39 {offsets = [0, 5], sizes = [8, 1], strides = [1, 1]} : vector<8x6xf32> to vector<8x1xf32>
    %42 = arith.mulf %37, %39 : vector<8x6xf32>
    %43 = vector.broadcast %41 : vector<8x1xf32> to vector<8x6xf32>
    %44 = arith.mulf %37, %43 : vector<8x6xf32>
    %45 = arith.addf %42, %44 : vector<8x6xf32>
    %46 = vector.broadcast %40 : vector<8x1xf32> to vector<8x6xf32>
    %47 = arith.mulf %46, %39 : vector<8x6xf32>
    %48 = arith.addf %45, %47 : vector<8x6xf32>
    %cst_11 = arith.constant dense<0.000000e+00> : vector<8xf32>
    %49 = vector.multi_reduction <add>, %48, %cst_11 [1] : vector<8x6xf32> to vector<8xf32>
    %50 = vector.shape_cast %49 : vector<8xf32> to vector<8x1xf32>
    %cst_12 = arith.constant 9.99999993E-9 : f32
    %51 = vector.broadcast %cst_12 : f32 to vector<8x1xf32>
    %52 = arith.addf %50, %51 : vector<8x1xf32>
    %53 = tpu.reciprocal %52 {approx = true} : vector<8x1xf32> -> vector<8x1xf32>
    %54 = vector.broadcast %53 : vector<8x1xf32> to vector<8x6xf32>
    %55 = arith.mulf %48, %54 : vector<8x6xf32>
    %c0_13 = arith.constant 0 : index
    %c4 = arith.constant 4 : index
    %c0_14 = arith.constant 0 : index
    %56 = vector.load %arg1[%c0_13, %c4, %c0_14] : memref<8x8x6xf32, #tpu.memory_space<vmem>>, vector<8x1x6xf32>
    %57 = vector.shape_cast %56 : vector<8x1x6xf32> to vector<8x6xf32>
    %58 = vector.extract_strided_slice %55 {offsets = [0, 5], sizes = [8, 1], strides = [1, 1]} : vector<8x6xf32> to vector<8x1xf32>
    %59 = vector.extract_strided_slice %57 {offsets = [0, 5], sizes = [8, 1], strides = [1, 1]} : vector<8x6xf32> to vector<8x1xf32>
    %60 = arith.mulf %55, %57 : vector<8x6xf32>
    %61 = vector.broadcast %59 : vector<8x1xf32> to vector<8x6xf32>
    %62 = arith.mulf %55, %61 : vector<8x6xf32>
    %63 = arith.addf %60, %62 : vector<8x6xf32>
    %64 = vector.broadcast %58 : vector<8x1xf32> to vector<8x6xf32>
    %65 = arith.mulf %64, %57 : vector<8x6xf32>
    %66 = arith.addf %63, %65 : vector<8x6xf32>
    %cst_15 = arith.constant dense<0.000000e+00> : vector<8xf32>
    %67 = vector.multi_reduction <add>, %66, %cst_15 [1] : vector<8x6xf32> to vector<8xf32>
    %68 = vector.shape_cast %67 : vector<8xf32> to vector<8x1xf32>
    %cst_16 = arith.constant 9.99999993E-9 : f32
    %69 = vector.broadcast %cst_16 : f32 to vector<8x1xf32>
    %70 = arith.addf %68, %69 : vector<8x1xf32>
    %71 = tpu.reciprocal %70 {approx = true} : vector<8x1xf32> -> vector<8x1xf32>
    %72 = vector.broadcast %71 : vector<8x1xf32> to vector<8x6xf32>
    %73 = arith.mulf %66, %72 : vector<8x6xf32>
    %c0_17 = arith.constant 0 : index
    %c5 = arith.constant 5 : index
    %c0_18 = arith.constant 0 : index
    %74 = vector.load %arg1[%c0_17, %c5, %c0_18] : memref<8x8x6xf32, #tpu.memory_space<vmem>>, vector<8x1x6xf32>
    %75 = vector.shape_cast %74 : vector<8x1x6xf32> to vector<8x6xf32>
    %76 = vector.extract_strided_slice %73 {offsets = [0, 5], sizes = [8, 1], strides = [1, 1]} : vector<8x6xf32> to vector<8x1xf32>
    %77 = vector.extract_strided_slice %75 {offsets = [0, 5], sizes = [8, 1], strides = [1, 1]} : vector<8x6xf32> to vector<8x1xf32>
    %78 = arith.mulf %73, %75 : vector<8x6xf32>
    %79 = vector.broadcast %77 : vector<8x1xf32> to vector<8x6xf32>
    %80 = arith.mulf %73, %79 : vector<8x6xf32>
    %81 = arith.addf %78, %80 : vector<8x6xf32>
    %82 = vector.broadcast %76 : vector<8x1xf32> to vector<8x6xf32>
    %83 = arith.mulf %82, %75 : vector<8x6xf32>
    %84 = arith.addf %81, %83 : vector<8x6xf32>
    %cst_19 = arith.constant dense<0.000000e+00> : vector<8xf32>
    %85 = vector.multi_reduction <add>, %84, %cst_19 [1] : vector<8x6xf32> to vector<8xf32>
    %86 = vector.shape_cast %85 : vector<8xf32> to vector<8x1xf32>
    %cst_20 = arith.constant 9.99999993E-9 : f32
    %87 = vector.broadcast %cst_20 : f32 to vector<8x1xf32>
    %88 = arith.addf %86, %87 : vector<8x1xf32>
    %89 = tpu.reciprocal %88 {approx = true} : vector<8x1xf32> -> vector<8x1xf32>
    %90 = vector.broadcast %89 : vector<8x1xf32> to vector<8x6xf32>
    %91 = arith.mulf %84, %90 : vector<8x6xf32>
    %c0_21 = arith.constant 0 : index
    %c6 = arith.constant 6 : index
    %c0_22 = arith.constant 0 : index
    %92 = vector.load %arg1[%c0_21, %c6, %c0_22] : memref<8x8x6xf32, #tpu.memory_space<vmem>>, vector<8x1x6xf32>
    %93 = vector.shape_cast %92 : vector<8x1x6xf32> to vector<8x6xf32>
    %94 = vector.extract_strided_slice %91 {offsets = [0, 5], sizes = [8, 1], strides = [1, 1]} : vector<8x6xf32> to vector<8x1xf32>
    %95 = vector.extract_strided_slice %93 {offsets = [0, 5], sizes = [8, 1], strides = [1, 1]} : vector<8x6xf32> to vector<8x1xf32>
    %96 = arith.mulf %91, %93 : vector<8x6xf32>
    %97 = vector.broadcast %95 : vector<8x1xf32> to vector<8x6xf32>
    %98 = arith.mulf %91, %97 : vector<8x6xf32>
    %99 = arith.addf %96, %98 : vector<8x6xf32>
    %100 = vector.broadcast %94 : vector<8x1xf32> to vector<8x6xf32>
    %101 = arith.mulf %100, %93 : vector<8x6xf32>
    %102 = arith.addf %99, %101 : vector<8x6xf32>
    %cst_23 = arith.constant dense<0.000000e+00> : vector<8xf32>
    %103 = vector.multi_reduction <add>, %102, %cst_23 [1] : vector<8x6xf32> to vector<8xf32>
    %104 = vector.shape_cast %103 : vector<8xf32> to vector<8x1xf32>
    %cst_24 = arith.constant 9.99999993E-9 : f32
    %105 = vector.broadcast %cst_24 : f32 to vector<8x1xf32>
    %106 = arith.addf %104, %105 : vector<8x1xf32>
    %107 = tpu.reciprocal %106 {approx = true} : vector<8x1xf32> -> vector<8x1xf32>
    %108 = vector.broadcast %107 : vector<8x1xf32> to vector<8x6xf32>
    %109 = arith.mulf %102, %108 : vector<8x6xf32>
    %c0_25 = arith.constant 0 : index
    %c7 = arith.constant 7 : index
    %c0_26 = arith.constant 0 : index
    %110 = vector.load %arg1[%c0_25, %c7, %c0_26] : memref<8x8x6xf32, #tpu.memory_space<vmem>>, vector<8x1x6xf32>
    %111 = vector.shape_cast %110 : vector<8x1x6xf32> to vector<8x6xf32>
    %112 = vector.extract_strided_slice %109 {offsets = [0, 5], sizes = [8, 1], strides = [1, 1]} : vector<8x6xf32> to vector<8x1xf32>
    %113 = vector.extract_strided_slice %111 {offsets = [0, 5], sizes = [8, 1], strides = [1, 1]} : vector<8x6xf32> to vector<8x1xf32>
    %114 = arith.mulf %109, %111 : vector<8x6xf32>
    %115 = vector.broadcast %113 : vector<8x1xf32> to vector<8x6xf32>
    %116 = arith.mulf %109, %115 : vector<8x6xf32>
    %117 = arith.addf %114, %116 : vector<8x6xf32>
    %118 = vector.broadcast %112 : vector<8x1xf32> to vector<8x6xf32>
    %119 = arith.mulf %118, %111 : vector<8x6xf32>
    %120 = arith.addf %117, %119 : vector<8x6xf32>
    %cst_27 = arith.constant dense<0.000000e+00> : vector<8xf32>
    %121 = vector.multi_reduction <add>, %120, %cst_27 [1] : vector<8x6xf32> to vector<8xf32>
    %122 = vector.shape_cast %121 : vector<8xf32> to vector<8x1xf32>
    %cst_28 = arith.constant 9.99999993E-9 : f32
    %123 = vector.broadcast %cst_28 : f32 to vector<8x1xf32>
    %124 = arith.addf %122, %123 : vector<8x1xf32>
    %125 = tpu.reciprocal %124 {approx = true} : vector<8x1xf32> -> vector<8x1xf32>
    %126 = vector.broadcast %125 : vector<8x1xf32> to vector<8x6xf32>
    %127 = arith.mulf %120, %126 : vector<8x6xf32>
    %c0_29 = arith.constant 0 : index
    %c0_30 = arith.constant 0 : index
    %128 = vector.load %arg2[%c0_29, %c0_30] : memref<8x6xf32, #tpu.memory_space<vmem>>, vector<8x6xf32>
    tpu.vector_store %arg2[%c0_29, %c0_30], %127 {strides = array<i32>} : memref<8x6xf32, #tpu.memory_space<vmem>>, vector<8x6xf32>,
    return
  }
  func.func @transform_0(%arg0: i32) -> (i32, i32, i32) {
    %c0_i32 = arith.constant 0 : i32
    %c0_i32_0 = arith.constant 0 : i32
    %c0_i32_1 = arith.constant 0 : i32
    return %arg0, %c0_i32, %c0_i32_0 : i32, i32, i32
  }
  func.func @transform_1(%arg0: i32) -> (i32, i32) {
    %c0_i32 = arith.constant 0 : i32
    %c0_i32_0 = arith.constant 0 : i32
    return %arg0, %c0_i32 : i32, i32
  }
}

</mosaic_0001>

<llo_original>
// kernel: ds3_dempster.1
$region0: #{ds3_dempster.1}
  #allocation0 [shape = 'u32[]', space=smem, size = 0x4, offset = 0x4, fixed_abs, tag = 'smem constant byte address 0x4 - core index']
  #allocation1 [shape = 'u32[144,128]{1,0:T(1,128)}', space=vmem, size = 0x12000, scoped, tag = 'internal scratch']
  %s0 = inlined_call_operand.vmem [shape: f32[8,8,6], index: 0, kind: input, shape index: {}]
  %s1 = inlined_call_operand.vmem [shape: f32[8,6], index: 1, kind: output, shape index: {}]
  %s2 = sld [smem:[#allocation0]]
  $region14: #{ds3_dempster.1} parent=0
    _
  %s4 = ssub.s32 1, %s2
  %s5 = scalar_select 0, %s4, %s2
  // Predicated region
  $region2: #{ds3_dempster.1} parent=0 // pred_check
    _
  $region3: #{ds3_dempster.1} parent=0 // pred_check_branch
    %7 = sbr.rel (0) target = $region5
  $region4: #{ds3_dempster.1} parent=0 // pred_region
    _
  $region5: #{ds3_dempster.1} parent=0 // pred_fallthru
    _
  %v8 = vld [vmem:[%s0] sm:$0x1]
  %v9 = vld [vmem:[%s0 + $0x8] sm:$0x1]
  %v10 = vld [vmem:[%s0 + $0x10] sm:$0x1]
  %v11 = vld [vmem:[%s0 + $0x18] sm:$0x1]
  %v12 = vld [vmem:[%s0 + $0x20] sm:$0x1]
  %v13 = vld [vmem:[%s0 + $0x28] sm:$0x1]
  %v14 = vld [vmem:[%s0 + $0x30] sm:$0x1]
  %v15 = vld [vmem:[%s0 + $0x38] sm:$0x1]
  %v16 = vld [vmem:[%s0 + $0x1] sm:$0x1]
  %v17 = vld [vmem:[%s0 + $0x9] sm:$0x1]
  %v18 = vld [vmem:[%s0 + $0x11] sm:$0x1]
  %v19 = vld [vmem:[%s0 + $0x19] sm:$0x1]
  %v20 = vld [vmem:[%s0 + $0x21] sm:$0x1]
  %v21 = vld [vmem:[%s0 + $0x29] sm:$0x1]
  %v22 = vld [vmem:[%s0 + $0x31] sm:$0x1]
  %v23 = vld [vmem:[%s0 + $0x39] sm:$0x1]
  %v24 = vmul.f32 %v8, %v16
  %v25 = vmul.f32 %v9, %v17
  %v26 = vmul.f32 %v10, %v18
  %v27 = vmul.f32 %v11, %v19
  %v28 = vmul.f32 %v12, %v20
  %v29 = vmul.f32 %v13, %v21
  %v30 = vmul.f32 %v14, %v22
  %v31 = vmul.f32 %v15, %v23
  %33 = vset.pattern.permute.xlu0 5
  %34 = vperm.xlu0 %33, %v16
  %v35 = vpop.permute.xlu0 %34
  %38 = vset.pattern.permute.xlu0 5
  %39 = vperm.xlu0 %38, %v17
  %v40 = vpop.permute.xlu0 %39
  %43 = vset.pattern.permute.xlu0 5
  %44 = vperm.xlu0 %43, %v18
  %v45 = vpop.permute.xlu0 %44
  %48 = vset.pattern.permute.xlu0 5
  %49 = vperm.xlu0 %48, %v19
  %v50 = vpop.permute.xlu0 %49
  %53 = vset.pattern.permute.xlu0 5
  %54 = vperm.xlu0 %53, %v20
  %v55 = vpop.permute.xlu0 %54
  %58 = vset.pattern.permute.xlu0 5
  %59 = vperm.xlu0 %58, %v21
  %v60 = vpop.permute.xlu0 %59
  %63 = vset.pattern.permute.xlu0 5
  %64 = vperm.xlu0 %63, %v22
  %v65 = vpop.permute.xlu0 %64
  %68 = vset.pattern.permute.xlu0 5
  %69 = vperm.xlu0 %68, %v23
  %v70 = vpop.permute.xlu0 %69
  %v72 = vmul.f32 %v8, %v35
  %v73 = vmul.f32 %v9, %v40
  %v74 = vmul.f32 %v10, %v45
  %v75 = vmul.f32 %v11, %v50
  %v76 = vmul.f32 %v12, %v55
  %v77 = vmul.f32 %v13, %v60
  %v78 = vmul.f32 %v14, %v65
  %v79 = vmul.f32 %v15, %v70
  %v80 = vadd.f32 %v24, %v72
  %v81 = vadd.f32 %v25, %v73
  %v82 = vadd.f32 %v26, %v74
  %v83 = vadd.f32 %v27, %v75
  %v84 = vadd.f32 %v28, %v76
  %v85 = vadd.f32 %v29, %v77
  %v86 = vadd.f32 %v30, %v78
  %v87 = vadd.f32 %v31, %v79
  %89 = vset.pattern.permute.xlu0 5
  %90 = vperm.xlu0 %89, %v8
  %v91 = vpop.permute.xlu0 %90
  %94 = vset.pattern.permute.xlu0 5
  %95 = vperm.xlu0 %94, %v9
  %v96 = vpop.permute.xlu0 %95
  %99 = vset.pattern.permute.xlu0 5
  %100 = vperm.xlu0 %99, %v10
  %v101 = vpop.permute.xlu0 %100
  %104 = vset.pattern.permute.xlu0 5
  %105 = vperm.xlu0 %104, %v11
  %v106 = vpop.permute.xlu0 %105
  %109 = vset.pattern.permute.xlu0 5
  %110 = vperm.xlu0 %109, %v12
  %v111 = vpop.permute.xlu0 %110
  %114 = vset.pattern.permute.xlu0 5
  %115 = vperm.xlu0 %114, %v13
  %v116 = vpop.permute.xlu0 %115
  %119 = vset.pattern.permute.xlu0 5
  %120 = vperm.xlu0 %119, %v14
  %v121 = vpop.permute.xlu0 %120
  %124 = vset.pattern.permute.xlu0 5
  %125 = vperm.xlu0 %124, %v15
  %v126 = vpop.permute.xlu0 %125
  %v128 = vmul.f32 %v91, %v16
  %v129 = vmul.f32 %v96, %v17
  %v130 = vmul.f32 %v101, %v18
  %v131 = vmul.f32 %v106, %v19
  %v132 = vmul.f32 %v111, %v20
  %v133 = vmul.f32 %v116, %v21
  %v134 = vmul.f32 %v121, %v22
  %v135 = vmul.f32 %v126, %v23
  %v136 = vadd.f32 %v80, %v128
  %v137 = vadd.f32 %v81, %v129
  %v138 = vadd.f32 %v82, %v130
  %v139 = vadd.f32 %v83, %v131
  %v140 = vadd.f32 %v84, %v132
  %v141 = vadd.f32 %v85, %v133
  %v142 = vadd.f32 %v86, %v134
  %v143 = vadd.f32 %v87, %v135
  %v152 = vrot.slane %v137, 7
  %vm153 = vcmask 1041409
  %v154 = vsel %vm153, %v152, %v136
  %v155 = vrot.slane %v138, 6
  %vm156 = vcmask 1042434
  %v157 = vsel %vm156, %v155, %v154
  %v158 = vrot.slane %v139, 5
  %vm159 = vcmask 1043459
  %v160 = vsel %vm159, %v158, %v157
  %v161 = vrot.slane %v140, 4
  %vm162 = vcmask 1044484
  %v163 = vsel %vm162, %v161, %v160
  %v164 = vrot.slane %v141, 3
  %vm165 = vcmask 1045509
  %v166 = vsel %vm165, %v164, %v163
  %v167 = vrot.slane %v142, 2
  %vm168 = vcmask 1046534
  %v169 = vsel %vm168, %v167, %v166
  %v170 = vrot.slane %v143, 1
  %vm171 = vcmask 1047559
  %v172 = vsel %vm171, %v170, %v169
  %vm174 = vcmask 48128
  %v175 = vsel %vm174, %v172, 0.0
  %176 = vadd.xlane.f32.xlu0 %v175
  %v177 = vpop.xlane.xlu0 %176
  %v178 = vadd.f32 %v177, 1e-08
  %v179 = vrcp.pop %v178
  %v181 = vrot.slane %v179, 1
  %v182 = vrot.slane %v179, 2
  %v183 = vrot.slane %v179, 3
  %v184 = vrot.slane %v179, 4
  %v185 = vrot.slane %v179, 5
  %v186 = vrot.slane %v179, 6
  %v187 = vrot.slane %v179, 7
  %v196 = vmul.f32 %v136, %v179
  %v197 = vmul.f32 %v137, %v181
  %v198 = vmul.f32 %v138, %v182
  %v199 = vmul.f32 %v139, %v183
  %v200 = vmul.f32 %v140, %v184
  %v201 = vmul.f32 %v141, %v185
  %v202 = vmul.f32 %v142, %v186
  %v203 = vmul.f32 %v143, %v187
  %v204 = vld [vmem:[%s0 + $0x2] sm:$0x1]
  %v205 = vld [vmem:[%s0 + $0xa] sm:$0x1]
  %v206 = vld [vmem:[%s0 + $0x12] sm:$0x1]
  %v207 = vld [vmem:[%s0 + $0x1a] sm:$0x1]
  %v208 = vld [vmem:[%s0 + $0x22] sm:$0x1]
  %v209 = vld [vmem:[%s0 + $0x2a] sm:$0x1]
  %v210 = vld [vmem:[%s0 + $0x32] sm:$0x1]
  %v211 = vld [vmem:[%s0 + $0x3a] sm:$0x1]
  %v212 = vmul.f32 %v196, %v204
  %v213 = vmul.f32 %v197, %v205
  %v214 = vmul.f32 %v198, %v206
  %v215 = vmul.f32 %v199, %v207
  %v216 = vmul.f32 %v200, %v208
  %v217 = vmul.f32 %v201, %v209
  %v218 = vmul.f32 %v202, %v210
  %v219 = vmul.f32 %v203, %v211
  %221 = vset.pattern.permute.xlu0 5
  %222 = vperm.xlu0 %221, %v204
  %v223 = vpop.permute.xlu0 %222
  %226 = vset.pattern.permute.xlu0 5
  %227 = vperm.xlu0 %226, %v205
  %v228 = vpop.permute.xlu0 %227
  %231 = vset.pattern.permute.xlu0 5
  %232 = vperm.xlu0 %231, %v206
  %v233 = vpop.permute.xlu0 %232
  %236 = vset.pattern.permute.xlu0 5
  %237 = vperm.xlu0 %236, %v207
  %v238 = vpop.permute.xlu0 %237
  %241 = vset.pattern.permute.xlu0 5
  %242 = vperm.xlu0 %241, %v208
  %v243 = vpop.permute.xlu0 %242
  %246 = vset.pattern.permute.xlu0 5
  %247 = vperm.xlu0 %246, %v209
  %v248 = vpop.permute.xlu0 %247
  %251 = vset.pattern.permute.xlu0 5
  %252 = vperm.xlu0 %251, %v210
  %v253 = vpop.permute.xlu0 %252
  %256 = vset.pattern.permute.xlu0 5
  %257 = vperm.xlu0 %256, %v211
  %v258 = vpop.permute.xlu0 %257
  %v260 = vmul.f32 %v196, %v223
  %v261 = vmul.f32 %v197, %v228
  %v262 = vmul.f32 %v198, %v233
  %v263 = vmul.f32 %v199, %v238
  %v264 = vmul.f32 %v200, %v243
  %v265 = vmul.f32 %v201, %v248
  %v266 = vmul.f32 %v202, %v253
  %v267 = vmul.f32 %v203, %v258
  %v268 = vadd.f32 %v212, %v260
  %v269 = vadd.f32 %v213, %v261
  %v270 = vadd.f32 %v214, %v262
  %v271 = vadd.f32 %v215, %v263
  %v272 = vadd.f32 %v216, %v264
  %v273 = vadd.f32 %v217, %v265
  %v274 = vadd.f32 %v218, %v266
  %v275 = vadd.f32 %v219, %v267
  %277 = vset.pattern.permute.xlu0 5
  %278 = vperm.xlu0 %277, %v196
  %v279 = vpop.permute.xlu0 %278
  %282 = vset.pattern.permute.xlu0 5
  %283 = vperm.xlu0 %282, %v197
  %v284 = vpop.permute.xlu0 %283
  %287 = vset.pattern.permute.xlu0 5
  %288 = vperm.xlu0 %287, %v198
  %v289 = vpop.permute.xlu0 %288
  %292 = vset.pattern.permute.xlu0 5
  %293 = vperm.xlu0 %292, %v199
  %v294 = vpop.permute.xlu0 %293
  %297 = vset.pattern.permute.xlu0 5
  %298 = vperm.xlu0 %297, %v200
  %v299 = vpop.permute.xlu0 %298
  %302 = vset.pattern.permute.xlu0 5
  %303 = vperm.xlu0 %302, %v201
  %v304 = vpop.permute.xlu0 %303
  %307 = vset.pattern.permute.xlu0 5
  %308 = vperm.xlu0 %307, %v202
  %v309 = vpop.permute.xlu0 %308
  %312 = vset.pattern.permute.xlu0 5
  %313 = vperm.xlu0 %312, %v203
  %v314 = vpop.permute.xlu0 %313
  %v316 = vmul.f32 %v279, %v204
  %v317 = vmul.f32 %v284, %v205
  %v318 = vmul.f32 %v289, %v206
  %v319 = vmul.f32 %v294, %v207
  %v320 = vmul.f32 %v299, %v208
  %v321 = vmul.f32 %v304, %v209
  %v322 = vmul.f32 %v309, %v210
  %v323 = vmul.f32 %v314, %v211
  %v324 = vadd.f32 %v268, %v316
  %v325 = vadd.f32 %v269, %v317
  %v326 = vadd.f32 %v270, %v318
  %v327 = vadd.f32 %v271, %v319
  %v328 = vadd.f32 %v272, %v320
  %v329 = vadd.f32 %v273, %v321
  %v330 = vadd.f32 %v274, %v322
  %v331 = vadd.f32 %v275, %v323
  %v340 = vrot.slane %v325, 7
  %v341 = vsel %vm153, %v340, %v324
  %v342 = vrot.slane %v326, 6
  %v343 = vsel %vm156, %v342, %v341
  %v344 = vrot.slane %v327, 5
  %v345 = vsel %vm159, %v344, %v343
  %v346 = vrot.slane %v328, 4
  %v347 = vsel %vm162, %v346, %v345
  %v348 = vrot.slane %v329, 3
  %v349 = vsel %vm165, %v348, %v347
  %v350 = vrot.slane %v330, 2
  %v351 = vsel %vm168, %v350, %v349
  %v352 = vrot.slane %v331, 1
  %v353 = vsel %vm171, %v352, %v351
  %v355 = vsel %vm174, %v353, 0.0
  %356 = vadd.xlane.f32.xlu0 %v355
  %v357 = vpop.xlane.xlu0 %356
  %v358 = vadd.f32 %v357, 1e-08
  %v359 = vrcp.pop %v358
  %v361 = vrot.slane %v359, 1
  %v362 = vrot.slane %v359, 2
  %v363 = vrot.slane %v359, 3
  %v364 = vrot.slane %v359, 4
  %v365 = vrot.slane %v359, 5
  %v366 = vrot.slane %v359, 6
  %v367 = vrot.slane %v359, 7
  %v376 = vmul.f32 %v324, %v359
  %v377 = vmul.f32 %v325, %v361
  %v378 = vmul.f32 %v326, %v362
  %v379 = vmul.f32 %v327, %v363
  %v380 = vmul.f32 %v328, %v364
  %v381 = vmul.f32 %v329, %v365
  %v382 = vmul.f32 %v330, %v366
  %v383 = vmul.f32 %v331, %v367
  %v384 = vld [vmem:[%s0 + $0x3] sm:$0x1]
  %v385 = vld [vmem:[%s0 + $0xb] sm:$0x1]
  %v386 = vld [vmem:[%s0 + $0x13] sm:$0x1]
  %v387 = vld [vmem:[%s0 + $0x1b] sm:$0x1]
  %v388 = vld [vmem:[%s0 + $0x23] sm:$0x1]
  %v389 = vld [vmem:[%s0 + $0x2b] sm:$0x1]
  %v390 = vld [vmem:[%s0 + $0x33] sm:$0x1]
  %v391 = vld [vmem:[%s0 + $0x3b] sm:$0x1]
  %v392 = vmul.f32 %v376, %v384
  %v393 = vmul.f32 %v377, %v385
  %v394 = vmul.f32 %v378, %v386
  %v395 = vmul.f32 %v379, %v387
  %v396 = vmul.f32 %v380, %v388
  %v397 = vmul.f32 %v381, %v389
  %v398 = vmul.f32 %v382, %v390
  %v399 = vmul.f32 %v383, %v391
  %401 = vset.pattern.permute.xlu0 5
  %402 = vperm.xlu0 %401, %v384
  %v403 = vpop.permute.xlu0 %402
  %406 = vset.pattern.permute.xlu0 5
  %407 = vperm.xlu0 %406, %v385
  %v408 = vpop.permute.xlu0 %407
  %411 = vset.pattern.permute.xlu0 5
  %412 = vperm.xlu0 %411, %v386
  %v413 = vpop.permute.xlu0 %412
  %416 = vset.pattern.permute.xlu0 5
  %417 = vperm.xlu0 %416, %v387
  %v418 = vpop.permute.xlu0 %417
  %421 = vset.pattern.permute.xlu0 5
  %422 = vperm.xlu0 %421, %v388
  %v423 = vpop.permute.xlu0 %422
  %426 = vset.pattern.permute.xlu0 5
  %427 = vperm.xlu0 %426, %v389
  %v428 = vpop.permute.xlu0 %427
  %431 = vset.pattern.permute.xlu0 5
  %432 = vperm.xlu0 %431, %v390
  %v433 = vpop.permute.xlu0 %432
  %436 = vset.pattern.permute.xlu0 5
  %437 = vperm.xlu0 %436, %v391
  %v438 = vpop.permute.xlu0 %437
  %v440 = vmul.f32 %v376, %v403
  %v441 = vmul.f32 %v377, %v408
  %v442 = vmul.f32 %v378, %v413
  %v443 = vmul.f32 %v379, %v418
  %v444 = vmul.f32 %v380, %v423
  %v445 = vmul.f32 %v381, %v428
  %v446 = vmul.f32 %v382, %v433
  %v447 = vmul.f32 %v383, %v438
  %v448 = vadd.f32 %v392, %v440
  %v449 = vadd.f32 %v393, %v441
  %v450 = vadd.f32 %v394, %v442
  %v451 = vadd.f32 %v395, %v443
  %v452 = vadd.f32 %v396, %v444
  %v453 = vadd.f32 %v397, %v445
  %v454 = vadd.f32 %v398, %v446
  %v455 = vadd.f32 %v399, %v447
  %457 = vset.pattern.permute.xlu0 5
  %458 = vperm.xlu0 %457, %v376
  %v459 = vpop.permute.xlu0 %458
  %462 = vset.pattern.permute.xlu0 5
  %463 = vperm.xlu0 %462, %v377
  %v464 = vpop.permute.xlu0 %463
  %467 = vset.pattern.permute.xlu0 5
  %468 = vperm.xlu0 %467, %v378
  %v469 = vpop.permute.xlu0 %468
  %472 = vset.pattern.permute.xlu0 5
  %473 = vperm.xlu0 %472, %v379
  %v474 = vpop.permute.xlu0 %473
  %477 = vset.pattern.permute.xlu0 5
  %478 = vperm.xlu0 %477, %v380
  %v479 = vpop.permute.xlu0 %478
  %482 = vset.pattern.permute.xlu0 5
  %483 = vperm.xlu0 %482, %v381
  %v484 = vpop.permute.xlu0 %483
  %487 = vset.pattern.permute.xlu0 5
  %488 = vperm.xlu0 %487, %v382
  %v489 = vpop.permute.xlu0 %488
  %492 = vset.pattern.permute.xlu0 5
  %493 = vperm.xlu0 %492, %v383
  %v494 = vpop.permute.xlu0 %493
  %v496 = vmul.f32 %v459, %v384
  %v497 = vmul.f32 %v464, %v385
  %v498 = vmul.f32 %v469, %v386
  %v499 = vmul.f32 %v474, %v387
  %v500 = vmul.f32 %v479, %v388
  %v501 = vmul.f32 %v484, %v389
  %v502 = vmul.f32 %v489, %v390
  %v503 = vmul.f32 %v494, %v391
  %v504 = vadd.f32 %v448, %v496
  %v505 = vadd.f32 %v449, %v497
  %v506 = vadd.f32 %v450, %v498
  %v507 = vadd.f32 %v451, %v499
  %v508 = vadd.f32 %v452, %v500
  %v509 = vadd.f32 %v453, %v501
  %v510 = vadd.f32 %v454, %v502
  %v511 = vadd.f32 %v455, %v503
  %v520 = vrot.slane %v505, 7
  %v521 = vsel %vm153, %v520, %v504
  %v522 = vrot.slane %v506, 6
  %v523 = vsel %vm156, %v522, %v521
  %v524 = vrot.slane %v507, 5
  %v525 = vsel %vm159, %v524, %v523
  %v526 = vrot.slane %v508, 4
  %v527 = vsel %vm162, %v526, %v525
  %v528 = vrot.slane %v509, 3
  %v529 = vsel %vm165, %v528, %v527
  %v530 = vrot.slane %v510, 2
  %v531 = vsel %vm168, %v530, %v529
  %v532 = vrot.slane %v511, 1
  %v533 = vsel %vm171, %v532, %v531
  %v535 = vsel %vm174, %v533, 0.0
  %536 = vadd.xlane.f32.xlu0 %v535
  %v537 = vpop.xlane.xlu0 %536
  %v538 = vadd.f32 %v537, 1e-08
  %v539 = vrcp.pop %v538
  %v541 = vrot.slane %v539, 1
  %v542 = vrot.slane %v539, 2
  %v543 = vrot.slane %v539, 3
  %v544 = vrot.slane %v539, 4
  %v545 = vrot.slane %v539, 5
  %v546 = vrot.slane %v539, 6
  %v547 = vrot.slane %v539, 7
  %v556 = vmul.f32 %v504, %v539
  %v557 = vmul.f32 %v505, %v541
  %v558 = vmul.f32 %v506, %v542
  %v559 = vmul.f32 %v507, %v543
  %v560 = vmul.f32 %v508, %v544
  %v561 = vmul.f32 %v509, %v545
  %v562 = vmul.f32 %v510, %v546
  %v563 = vmul.f32 %v511, %v547
  %v564 = vld [vmem:[%s0 + $0x4] sm:$0x1]
  %v565 = vld [vmem:[%s0 + $0xc] sm:$0x1]
  %v566 = vld [vmem:[%s0 + $0x14] sm:$0x1]
  %v567 = vld [vmem:[%s0 + $0x1c] sm:$0x1]
  %v568 = vld [vmem:[%s0 + $0x24] sm:$0x1]
  %v569 = vld [vmem:[%s0 + $0x2c] sm:$0x1]
  %v570 = vld [vmem:[%s0 + $0x34] sm:$0x1]
  %v571 = vld [vmem:[%s0 + $0x3c] sm:$0x1]
  %v572 = vmul.f32 %v556, %v564
  %v573 = vmul.f32 %v557, %v565
  %v574 = vmul.f32 %v558, %v566
  %v575 = vmul.f32 %v559, %v567
  %v576 = vmul.f32 %v560, %v568
  %v577 = vmul.f32 %v561, %v569
  %v578 = vmul.f32 %v562, %v570
  %v579 = vmul.f32 %v563, %v571
  %581 = vset.pattern.permute.xlu0 5
  %582 = vperm.xlu0 %581, %v564
  %v583 = vpop.permute.xlu0 %582
  %586 = vset.pattern.permute.xlu0 5
  %587 = vperm.xlu0 %586, %v565
  %v588 = vpop.permute.xlu0 %587
  %591 = vset.pattern.permute.xlu0 5
  %592 = vperm.xlu0 %591, %v566
  %v593 = vpop.permute.xlu0 %592
  %596 = vset.pattern.permute.xlu0 5
  %597 = vperm.xlu0 %596, %v567
  %v598 = vpop.permute.xlu0 %597
  %601 = vset.pattern.permute.xlu0 5
  %602 = vperm.xlu0 %601, %v568
  %v603 = vpop.permute.xlu0 %602
  %606 = vset.pattern.permute.xlu0 5
  %607 = vperm.xlu0 %606, %v569
  %v608 = vpop.permute.xlu0 %607
  %611 = vset.pattern.permute.xlu0 5
  %612 = vperm.xlu0 %611, %v570
  %v613 = vpop.permute.xlu0 %612
  %616 = vset.pattern.permute.xlu0 5
  %617 = vperm.xlu0 %616, %v571
  %v618 = vpop.permute.xlu0 %617
  %v620 = vmul.f32 %v556, %v583
  %v621 = vmul.f32 %v557, %v588
  %v622 = vmul.f32 %v558, %v593
  %v623 = vmul.f32 %v559, %v598
  %v624 = vmul.f32 %v560, %v603
  %v625 = vmul.f32 %v561, %v608
  %v626 = vmul.f32 %v562, %v613
  %v627 = vmul.f32 %v563, %v618
  %v628 = vadd.f32 %v572, %v620
  %v629 = vadd.f32 %v573, %v621
  %v630 = vadd.f32 %v574, %v622
  %v631 = vadd.f32 %v575, %v623
  %v632 = vadd.f32 %v576, %v624
  %v633 = vadd.f32 %v577, %v625
  %v634 = vadd.f32 %v578, %v626
  %v635 = vadd.f32 %v579, %v627
  %637 = vset.pattern.permute.xlu0 5
  %638 = vperm.xlu0 %637, %v556
  %v639 = vpop.permute.xlu0 %638
  %642 = vset.pattern.permute.xlu0 5
  %643 = vperm.xlu0 %642, %v557
  %v644 = vpop.permute.xlu0 %643
  %647 = vset.pattern.permute.xlu0 5
  %648 = vperm.xlu0 %647, %v558
  %v649 = vpop.permute.xlu0 %648
  %652 = vset.pattern.permute.xlu0 5
  %653 = vperm.xlu0 %652, %v559
  %v654 = vpop.permute.xlu0 %653
  %657 = vset.pattern.permute.xlu0 5
  %658 = vperm.xlu0 %657, %v560
  %v659 = vpop.permute.xlu0 %658
  %662 = vset.pattern.permute.xlu0 5
  %663 = vperm.xlu0 %662, %v561
  %v664 = vpop.permute.xlu0 %663
  %667 = vset.pattern.permute.xlu0 5
  %668 = vperm.xlu0 %667, %v562
  %v669 = vpop.permute.xlu0 %668
  %672 = vset.pattern.permute.xlu0 5
  %673 = vperm.xlu0 %672, %v563
  %v674 = vpop.permute.xlu0 %673
  %v676 = vmul.f32 %v639, %v564
  %v677 = vmul.f32 %v644, %v565
  %v678 = vmul.f32 %v649, %v566
  %v679 = vmul.f32 %v654, %v567
  %v680 = vmul.f32 %v659, %v568
  %v681 = vmul.f32 %v664, %v569
  %v682 = vmul.f32 %v669, %v570
  %v683 = vmul.f32 %v674, %v571
  %v684 = vadd.f32 %v628, %v676
  %v685 = vadd.f32 %v629, %v677
  %v686 = vadd.f32 %v630, %v678
  %v687 = vadd.f32 %v631, %v679
  %v688 = vadd.f32 %v632, %v680
  %v689 = vadd.f32 %v633, %v681
  %v690 = vadd.f32 %v634, %v682
  %v691 = vadd.f32 %v635, %v683
  %v700 = vrot.slane %v685, 7
  %v701 = vsel %vm153, %v700, %v684
  %v702 = vrot.slane %v686, 6
  %v703 = vsel %vm156, %v702, %v701
  %v704 = vrot.slane %v687, 5
  %v705 = vsel %vm159, %v704, %v703
  %v706 = vrot.slane %v688, 4
  %v707 = vsel %vm162, %v706, %v705
  %v708 = vrot.slane %v689, 3
  %v709 = vsel %vm165, %v708, %v707
  %v710 = vrot.slane %v690, 2
  %v711 = vsel %vm168, %v710, %v709
  %v712 = vrot.slane %v691, 1
  %v713 = vsel %vm171, %v712, %v711
  %v715 = vsel %vm174, %v713, 0.0
  %716 = vadd.xlane.f32.xlu0 %v715
  %v717 = vpop.xlane.xlu0 %716
  %v718 = vadd.f32 %v717, 1e-08
  %v719 = vrcp.pop %v718
  %v721 = vrot.slane %v719, 1
  %v722 = vrot.slane %v719, 2
  %v723 = vrot.slane %v719, 3
  %v724 = vrot.slane %v719, 4
  %v725 = vrot.slane %v719, 5
  %v726 = vrot.slane %v719, 6
  %v727 = vrot.slane %v719, 7
  %v736 = vmul.f32 %v684, %v719
  %v737 = vmul.f32 %v685, %v721
  %v738 = vmul.f32 %v686, %v722
  %v739 = vmul.f32 %v687, %v723
  %v740 = vmul.f32 %v688, %v724
  %v741 = vmul.f32 %v689, %v725
  %v742 = vmul.f32 %v690, %v726
  %v743 = vmul.f32 %v691, %v727
  %v744 = vld [vmem:[%s0 + $0x5] sm:$0x1]
  %v745 = vld [vmem:[%s0 + $0xd] sm:$0x1]
  %v746 = vld [vmem:[%s0 + $0x15] sm:$0x1]
  %v747 = vld [vmem:[%s0 + $0x1d] sm:$0x1]
  %v748 = vld [vmem:[%s0 + $0x25] sm:$0x1]
  %v749 = vld [vmem:[%s0 + $0x2d] sm:$0x1]
  %v750 = vld [vmem:[%s0 + $0x35] sm:$0x1]
  %v751 = vld [vmem:[%s0 + $0x3d] sm:$0x1]
  %v752 = vmul.f32 %v736, %v744
  %v753 = vmul.f32 %v737, %v745
  %v754 = vmul.f32 %v738, %v746
  %v755 = vmul.f32 %v739, %v747
  %v756 = vmul.f32 %v740, %v748
  %v757 = vmul.f32 %v741, %v749
  %v758 = vmul.f32 %v742, %v750
  %v759 = vmul.f32 %v743, %v751
  %761 = vset.pattern.permute.xlu0 5
  %762 = vperm.xlu0 %761, %v744
  %v763 = vpop.permute.xlu0 %762
  %766 = vset.pattern.permute.xlu0 5
  %767 = vperm.xlu0 %766, %v745
  %v768 = vpop.permute.xlu0 %767
  %771 = vset.pattern.permute.xlu0 5
  %772 = vperm.xlu0 %771, %v746
  %v773 = vpop.permute.xlu0 %772
  %776 = vset.pattern.permute.xlu0 5
  %777 = vperm.xlu0 %776, %v747
  %v778 = vpop.permute.xlu0 %777
  %781 = vset.pattern.permute.xlu0 5
  %782 = vperm.xlu0 %781, %v748
  %v783 = vpop.permute.xlu0 %782
  %786 = vset.pattern.permute.xlu0 5
  %787 = vperm.xlu0 %786, %v749
  %v788 = vpop.permute.xlu0 %787
  %791 = vset.pattern.permute.xlu0 5
  %792 = vperm.xlu0 %791, %v750
  %v793 = vpop.permute.xlu0 %792
  %796 = vset.pattern.permute.xlu0 5
  %797 = vperm.xlu0 %796, %v751
  %v798 = vpop.permute.xlu0 %797
  %v800 = vmul.f32 %v736, %v763
  %v801 = vmul.f32 %v737, %v768
  %v802 = vmul.f32 %v738, %v773
  %v803 = vmul.f32 %v739, %v778
  %v804 = vmul.f32 %v740, %v783
  %v805 = vmul.f32 %v741, %v788
  %v806 = vmul.f32 %v742, %v793
  %v807 = vmul.f32 %v743, %v798
  %v808 = vadd.f32 %v752, %v800
  %v809 = vadd.f32 %v753, %v801
  %v810 = vadd.f32 %v754, %v802
  %v811 = vadd.f32 %v755, %v803
  %v812 = vadd.f32 %v756, %v804
  %v813 = vadd.f32 %v757, %v805
  %v814 = vadd.f32 %v758, %v806
  %v815 = vadd.f32 %v759, %v807
  %817 = vset.pattern.permute.xlu0 5
  %818 = vperm.xlu0 %817, %v736
  %v819 = vpop.permute.xlu0 %818
  %822 = vset.pattern.permute.xlu0 5
  %823 = vperm.xlu0 %822, %v737
  %v824 = vpop.permute.xlu0 %823
  %827 = vset.pattern.permute.xlu0 5
  %828 = vperm.xlu0 %827, %v738
  %v829 = vpop.permute.xlu0 %828
  %832 = vset.pattern.permute.xlu0 5
  %833 = vperm.xlu0 %832, %v739
  %v834 = vpop.permute.xlu0 %833
  %837 = vset.pattern.permute.xlu0 5
  %838 = vperm.xlu0 %837, %v740
  %v839 = vpop.permute.xlu0 %838
  %842 = vset.pattern.permute.xlu0 5
  %843 = vperm.xlu0 %842, %v741
  %v844 = vpop.permute.xlu0 %843
  %847 = vset.pattern.permute.xlu0 5
  %848 = vperm.xlu0 %847, %v742
  %v849 = vpop.permute.xlu0 %848
  %852 = vset.pattern.permute.xlu0 5
  %853 = vperm.xlu0 %852, %v743
  %v854 = vpop.permute.xlu0 %853
  %v856 = vmul.f32 %v819, %v744
  %v857 = vmul.f32 %v824, %v745
  %v858 = vmul.f32 %v829, %v746
  %v859 = vmul.f32 %v834, %v747
  %v860 = vmul.f32 %v839, %v748
  %v861 = vmul.f32 %v844, %v749
  %v862 = vmul.f32 %v849, %v750
  %v863 = vmul.f32 %v854, %v751
  %v864 = vadd.f32 %v808, %v856
  %v865 = vadd.f32 %v809, %v857
  %v866 = vadd.f32 %v810, %v858
  %v867 = vadd.f32 %v811, %v859
  %v868 = vadd.f32 %v812, %v860
  %v869 = vadd.f32 %v813, %v861
  %v870 = vadd.f32 %v814, %v862
  %v871 = vadd.f32 %v815, %v863
  %v880 = vrot.slane %v865, 7
  %v881 = vsel %vm153, %v880, %v864
  %v882 = vrot.slane %v866, 6
  %v883 = vsel %vm156, %v882, %v881
  %v884 = vrot.slane %v867, 5
  %v885 = vsel %vm159, %v884, %v883
  %v886 = vrot.slane %v868, 4
  %v887 = vsel %vm162, %v886, %v885
  %v888 = vrot.slane %v869, 3
  %v889 = vsel %vm165, %v888, %v887
  %v890 = vrot.slane %v870, 2
  %v891 = vsel %vm168, %v890, %v889
  %v892 = vrot.slane %v871, 1
  %v893 = vsel %vm171, %v892, %v891
  %v895 = vsel %vm174, %v893, 0.0
  %896 = vadd.xlane.f32.xlu0 %v895
  %v897 = vpop.xlane.xlu0 %896
  %v898 = vadd.f32 %v897, 1e-08
  %v899 = vrcp.pop %v898
  %v901 = vrot.slane %v899, 1
  %v902 = vrot.slane %v899, 2
  %v903 = vrot.slane %v899, 3
  %v904 = vrot.slane %v899, 4
  %v905 = vrot.slane %v899, 5
  %v906 = vrot.slane %v899, 6
  %v907 = vrot.slane %v899, 7
  %v916 = vmul.f32 %v864, %v899
  %v917 = vmul.f32 %v865, %v901
  %v918 = vmul.f32 %v866, %v902
  %v919 = vmul.f32 %v867, %v903
  %v920 = vmul.f32 %v868, %v904
  %v921 = vmul.f32 %v869, %v905
  %v922 = vmul.f32 %v870, %v906
  %v923 = vmul.f32 %v871, %v907
  %v924 = vld [vmem:[%s0 + $0x6] sm:$0x1]
  %v925 = vld [vmem:[%s0 + $0xe] sm:$0x1]
  %v926 = vld [vmem:[%s0 + $0x16] sm:$0x1]
  %v927 = vld [vmem:[%s0 + $0x1e] sm:$0x1]
  %v928 = vld [vmem:[%s0 + $0x26] sm:$0x1]
  %v929 = vld [vmem:[%s0 + $0x2e] sm:$0x1]
  %v930 = vld [vmem:[%s0 + $0x36] sm:$0x1]
  %v931 = vld [vmem:[%s0 + $0x3e] sm:$0x1]
  %v932 = vmul.f32 %v916, %v924
  %v933 = vmul.f32 %v917, %v925
  %v934 = vmul.f32 %v918, %v926
  %v935 = vmul.f32 %v919, %v927
  %v936 = vmul.f32 %v920, %v928
  %v937 = vmul.f32 %v921, %v929
  %v938 = vmul.f32 %v922, %v930
  %v939 = vmul.f32 %v923, %v931
  %941 = vset.pattern.permute.xlu0 5
  %942 = vperm.xlu0 %941, %v924
  %v943 = vpop.permute.xlu0 %942
  %946 = vset.pattern.permute.xlu0 5
  %947 = vperm.xlu0 %946, %v925
  %v948 = vpop.permute.xlu0 %947
  %951 = vset.pattern.permute.xlu0 5
  %952 = vperm.xlu0 %951, %v926
  %v953 = vpop.permute.xlu0 %952
  %956 = vset.pattern.permute.xlu0 5
  %957 = vperm.xlu0 %956, %v927
  %v958 = vpop.permute.xlu0 %957
  %961 = vset.pattern.permute.xlu0 5
  %962 = vperm.xlu0 %961, %v928
  %v963 = vpop.permute.xlu0 %962
  %966 = vset.pattern.permute.xlu0 5
  %967 = vperm.xlu0 %966, %v929
  %v968 = vpop.permute.xlu0 %967
  %971 = vset.pattern.permute.xlu0 5
  %972 = vperm.xlu0 %971, %v930
  %v973 = vpop.permute.xlu0 %972
  %976 = vset.pattern.permute.xlu0 5
  %977 = vperm.xlu0 %976, %v931
  %v978 = vpop.permute.xlu0 %977
  %v980 = vmul.f32 %v916, %v943
  %v981 = vmul.f32 %v917, %v948
  %v982 = vmul.f32 %v918, %v953
  %v983 = vmul.f32 %v919, %v958
  %v984 = vmul.f32 %v920, %v963
  %v985 = vmul.f32 %v921, %v968
  %v986 = vmul.f32 %v922, %v973
  %v987 = vmul.f32 %v923, %v978
  %v988 = vadd.f32 %v932, %v980
  %v989 = vadd.f32 %v933, %v981
  %v990 = vadd.f32 %v934, %v982
  %v991 = vadd.f32 %v935, %v983
  %v992 = vadd.f32 %v936, %v984
  %v993 = vadd.f32 %v937, %v985
  %v994 = vadd.f32 %v938, %v986
  %v995 = vadd.f32 %v939, %v987
  %997 = vset.pattern.permute.xlu0 5
  %998 = vperm.xlu0 %997, %v916
  %v999 = vpop.permute.xlu0 %998
  %1002 = vset.pattern.permute.xlu0 5
  %1003 = vperm.xlu0 %1002, %v917
  %v1004 = vpop.permute.xlu0 %1003
  %1007 = vset.pattern.permute.xlu0 5
  %1008 = vperm.xlu0 %1007, %v918
  %v1009 = vpop.permute.xlu0 %1008
  %1012 = vset.pattern.permute.xlu0 5
  %1013 = vperm.xlu0 %1012, %v919
  %v1014 = vpop.permute.xlu0 %1013
  %1017 = vset.pattern.permute.xlu0 5
  %1018 = vperm.xlu0 %1017, %v920
  %v1019 = vpop.permute.xlu0 %1018
  %1022 = vset.pattern.permute.xlu0 5
  %1023 = vperm.xlu0 %1022, %v921
  %v1024 = vpop.permute.xlu0 %1023
  %1027 = vset.pattern.permute.xlu0 5
  %1028 = vperm.xlu0 %1027, %v922
  %v1029 = vpop.permute.xlu0 %1028
  %1032 = vset.pattern.permute.xlu0 5
  %1033 = vperm.xlu0 %1032, %v923
  %v1034 = vpop.permute.xlu0 %1033
  %v1036 = vmul.f32 %v999, %v924
  %v1037 = vmul.f32 %v1004, %v925
  %v1038 = vmul.f32 %v1009, %v926
  %v1039 = vmul.f32 %v1014, %v927
  %v1040 = vmul.f32 %v1019, %v928
  %v1041 = vmul.f32 %v1024, %v929
  %v1042 = vmul.f32 %v1029, %v930
  %v1043 = vmul.f32 %v1034, %v931
  %v1044 = vadd.f32 %v988, %v1036
  %v1045 = vadd.f32 %v989, %v1037
  %v1046 = vadd.f32 %v990, %v1038
  %v1047 = vadd.f32 %v991, %v1039
  %v1048 = vadd.f32 %v992, %v1040
  %v1049 = vadd.f32 %v993, %v1041
  %v1050 = vadd.f32 %v994, %v1042
  %v1051 = vadd.f32 %v995, %v1043
  %v1060 = vrot.slane %v1045, 7
  %v1061 = vsel %vm153, %v1060, %v1044
  %v1062 = vrot.slane %v1046, 6
  %v1063 = vsel %vm156, %v1062, %v1061
  %v1064 = vrot.slane %v1047, 5
  %v1065 = vsel %vm159, %v1064, %v1063
  %v1066 = vrot.slane %v1048, 4
  %v1067 = vsel %vm162, %v1066, %v1065
  %v1068 = vrot.slane %v1049, 3
  %v1069 = vsel %vm165, %v1068, %v1067
  %v1070 = vrot.slane %v1050, 2
  %v1071 = vsel %vm168, %v1070, %v1069
  %v1072 = vrot.slane %v1051, 1
  %v1073 = vsel %vm171, %v1072, %v1071
  %v1075 = vsel %vm174, %v1073, 0.0
  %1076 = vadd.xlane.f32.xlu0 %v1075
  %v1077 = vpop.xlane.xlu0 %1076
  %v1078 = vadd.f32 %v1077, 1e-08
  %v1079 = vrcp.pop %v1078
  %v1081 = vrot.slane %v1079, 1
  %v1082 = vrot.slane %v1079, 2
  %v1083 = vrot.slane %v1079, 3
  %v1084 = vrot.slane %v1079, 4
  %v1085 = vrot.slane %v1079, 5
  %v1086 = vrot.slane %v1079, 6
  %v1087 = vrot.slane %v1079, 7
  %v1096 = vmul.f32 %v1044, %v1079
  %v1097 = vmul.f32 %v1045, %v1081
  %v1098 = vmul.f32 %v1046, %v1082
  %v1099 = vmul.f32 %v1047, %v1083
  %v1100 = vmul.f32 %v1048, %v1084
  %v1101 = vmul.f32 %v1049, %v1085
  %v1102 = vmul.f32 %v1050, %v1086
  %v1103 = vmul.f32 %v1051, %v1087
  %v1104 = vld [vmem:[%s0 + $0x7] sm:$0x1]
  %v1105 = vld [vmem:[%s0 + $0xf] sm:$0x1]
  %v1106 = vld [vmem:[%s0 + $0x17] sm:$0x1]
  %v1107 = vld [vmem:[%s0 + $0x1f] sm:$0x1]
  %v1108 = vld [vmem:[%s0 + $0x27] sm:$0x1]
  %v1109 = vld [vmem:[%s0 + $0x2f] sm:$0x1]
  %v1110 = vld [vmem:[%s0 + $0x37] sm:$0x1]
  %v1111 = vld [vmem:[%s0 + $0x3f] sm:$0x1]
  %v1112 = vmul.f32 %v1096, %v1104
  %v1113 = vmul.f32 %v1097, %v1105
  %v1114 = vmul.f32 %v1098, %v1106
  %v1115 = vmul.f32 %v1099, %v1107
  %v1116 = vmul.f32 %v1100, %v1108
  %v1117 = vmul.f32 %v1101, %v1109
  %v1118 = vmul.f32 %v1102, %v1110
  %v1119 = vmul.f32 %v1103, %v1111
  %1121 = vset.pattern.permute.xlu0 5
  %1122 = vperm.xlu0 %1121, %v1104
  %v1123 = vpop.permute.xlu0 %1122
  %1126 = vset.pattern.permute.xlu0 5
  %1127 = vperm.xlu0 %1126, %v1105
  %v1128 = vpop.permute.xlu0 %1127
  %1131 = vset.pattern.permute.xlu0 5
  %1132 = vperm.xlu0 %1131, %v1106
  %v1133 = vpop.permute.xlu0 %1132
  %1136 = vset.pattern.permute.xlu0 5
  %1137 = vperm.xlu0 %1136, %v1107
  %v1138 = vpop.permute.xlu0 %1137
  %1141 = vset.pattern.permute.xlu0 5
  %1142 = vperm.xlu0 %1141, %v1108
  %v1143 = vpop.permute.xlu0 %1142
  %1146 = vset.pattern.permute.xlu0 5
  %1147 = vperm.xlu0 %1146, %v1109
  %v1148 = vpop.permute.xlu0 %1147
  %1151 = vset.pattern.permute.xlu0 5
  %1152 = vperm.xlu0 %1151, %v1110
  %v1153 = vpop.permute.xlu0 %1152
  %1156 = vset.pattern.permute.xlu0 5
  %1157 = vperm.xlu0 %1156, %v1111
  %v1158 = vpop.permute.xlu0 %1157
  %v1160 = vmul.f32 %v1096, %v1123
  %v1161 = vmul.f32 %v1097, %v1128
  %v1162 = vmul.f32 %v1098, %v1133
  %v1163 = vmul.f32 %v1099, %v1138
  %v1164 = vmul.f32 %v1100, %v1143
  %v1165 = vmul.f32 %v1101, %v1148
  %v1166 = vmul.f32 %v1102, %v1153
  %v1167 = vmul.f32 %v1103, %v1158
  %v1168 = vadd.f32 %v1112, %v1160
  %v1169 = vadd.f32 %v1113, %v1161
  %v1170 = vadd.f32 %v1114, %v1162
  %v1171 = vadd.f32 %v1115, %v1163
  %v1172 = vadd.f32 %v1116, %v1164
  %v1173 = vadd.f32 %v1117, %v1165
  %v1174 = vadd.f32 %v1118, %v1166
  %v1175 = vadd.f32 %v1119, %v1167
  %1177 = vset.pattern.permute.xlu0 5
  %1178 = vperm.xlu0 %1177, %v1096
  %v1179 = vpop.permute.xlu0 %1178
  %1182 = vset.pattern.permute.xlu0 5
  %1183 = vperm.xlu0 %1182, %v1097
  %v1184 = vpop.permute.xlu0 %1183
  %1187 = vset.pattern.permute.xlu0 5
  %1188 = vperm.xlu0 %1187, %v1098
  %v1189 = vpop.permute.xlu0 %1188
  %1192 = vset.pattern.permute.xlu0 5
  %1193 = vperm.xlu0 %1192, %v1099
  %v1194 = vpop.permute.xlu0 %1193
  %1197 = vset.pattern.permute.xlu0 5
  %1198 = vperm.xlu0 %1197, %v1100
  %v1199 = vpop.permute.xlu0 %1198
  %1202 = vset.pattern.permute.xlu0 5
  %1203 = vperm.xlu0 %1202, %v1101
  %v1204 = vpop.permute.xlu0 %1203
  %1207 = vset.pattern.permute.xlu0 5
  %1208 = vperm.xlu0 %1207, %v1102
  %v1209 = vpop.permute.xlu0 %1208
  %1212 = vset.pattern.permute.xlu0 5
  %1213 = vperm.xlu0 %1212, %v1103
  %v1214 = vpop.permute.xlu0 %1213
  %v1216 = vmul.f32 %v1179, %v1104
  %v1217 = vmul.f32 %v1184, %v1105
  %v1218 = vmul.f32 %v1189, %v1106
  %v1219 = vmul.f32 %v1194, %v1107
  %v1220 = vmul.f32 %v1199, %v1108
  %v1221 = vmul.f32 %v1204, %v1109
  %v1222 = vmul.f32 %v1209, %v1110
  %v1223 = vmul.f32 %v1214, %v1111
  %v1224 = vadd.f32 %v1168, %v1216
  %v1225 = vadd.f32 %v1169, %v1217
  %v1226 = vadd.f32 %v1170, %v1218
  %v1227 = vadd.f32 %v1171, %v1219
  %v1228 = vadd.f32 %v1172, %v1220
  %v1229 = vadd.f32 %v1173, %v1221
  %v1230 = vadd.f32 %v1174, %v1222
  %v1231 = vadd.f32 %v1175, %v1223
  %v1240 = vrot.slane %v1225, 7
  %v1241 = vsel %vm153, %v1240, %v1224
  %v1242 = vrot.slane %v1226, 6
  %v1243 = vsel %vm156, %v1242, %v1241
  %v1244 = vrot.slane %v1227, 5
  %v1245 = vsel %vm159, %v1244, %v1243
  %v1246 = vrot.slane %v1228, 4
  %v1247 = vsel %vm162, %v1246, %v1245
  %v1248 = vrot.slane %v1229, 3
  %v1249 = vsel %vm165, %v1248, %v1247
  %v1250 = vrot.slane %v1230, 2
  %v1251 = vsel %vm168, %v1250, %v1249
  %v1252 = vrot.slane %v1231, 1
  %v1253 = vsel %vm171, %v1252, %v1251
  %v1255 = vsel %vm174, %v1253, 0.0
  %1256 = vadd.xlane.f32.xlu0 %v1255
  %v1257 = vpop.xlane.xlu0 %1256
  %v1258 = vadd.f32 %v1257, 1e-08
  %v1259 = vrcp.pop %v1258
  %v1261 = vrot.slane %v1259, 1
  %v1262 = vrot.slane %v1259, 2
  %v1263 = vrot.slane %v1259, 3
  %v1264 = vrot.slane %v1259, 4
  %v1265 = vrot.slane %v1259, 5
  %v1266 = vrot.slane %v1259, 6
  %v1267 = vrot.slane %v1259, 7
  %v1276 = vmul.f32 %v1224, %v1259
  %v1277 = vmul.f32 %v1225, %v1261
  %v1278 = vmul.f32 %v1226, %v1262
  %v1279 = vmul.f32 %v1227, %v1263
  %v1280 = vmul.f32 %v1228, %v1264
  %v1281 = vmul.f32 %v1229, %v1265
  %v1282 = vmul.f32 %v1230, %v1266
  %v1283 = vmul.f32 %v1231, %v1267
  %v1292 = vrot.slane %v1277, 7
  %v1293 = vsel %vm153, %v1292, %v1276
  %v1294 = vrot.slane %v1278, 6
  %v1295 = vsel %vm156, %v1294, %v1293
  %v1296 = vrot.slane %v1279, 5
  %v1297 = vsel %vm159, %v1296, %v1295
  %v1298 = vrot.slane %v1280, 4
  %v1299 = vsel %vm162, %v1298, %v1297
  %v1300 = vrot.slane %v1281, 3
  %v1301 = vsel %vm165, %v1300, %v1299
  %v1302 = vrot.slane %v1282, 2
  %v1303 = vsel %vm168, %v1302, %v1301
  %v1304 = vrot.slane %v1283, 1
  %v1305 = vsel %vm171, %v1304, %v1303
  %1307 = vst.msk [vmem:[%s1] sm:$0xff] %vm174, %v1305
  // Predicated region
  $region6: #{ds3_dempster.1} parent=0 // pred_check
    _
  $region7: #{ds3_dempster.1} parent=0 // pred_check_branch
    %1309 = sbr.rel (0) target = $region9
  $region8: #{ds3_dempster.1} parent=0 // pred_region
    _
  $region9: #{ds3_dempster.1} parent=0 // pred_fallthru
    _
  // Predicated region
  $region10: #{ds3_dempster.1} parent=0 // pred_check
    _
  $region11: #{ds3_dempster.1} parent=0 // pred_check_branch
    %1311 = sbr.rel (0) target = $region13
  $region12: #{ds3_dempster.1} parent=0 // pred_region
    _
  $region13: #{ds3_dempster.1} parent=0 // pred_fallthru
    _

</llo_original>
